<compile_context>
chip_gen: v7x
topology: tpu7x:2x2x1
jax: 0.10.0
libtpu: 0.0.40
codegen_flags: <defaults>
</compile_context>

<pallas_src>
import jax
import jax.numpy as jnp
from jax.experimental import pallas as pl
from jax.experimental.pallas import tpu as pltpu

H1 = 64
H2 = 1600


def _round_up(n, m):
    return ((n + m - 1) // m) * m


def _fcn_kernel(x_ref, w1_ref, b1_ref, w2_ref, b2_ref, o_ref):
    # Layer 1: hidden = tanh(x @ W1 + b1)  (MXU bf16 matmul, f32 acc; tanh on EUP)
    x = x_ref[...].astype(jnp.bfloat16)
    h = jnp.tanh(
        jnp.dot(x, w1_ref[...], preferred_element_type=jnp.float32) + b1_ref[...]
    )
    # Layer 2: out = |h @ W2 + b2|         (MXU bf16 matmul, f32 acc; abs on VPU)
    y = (
        jnp.dot(h.astype(jnp.bfloat16), w2_ref[...],
                preferred_element_type=jnp.float32)
        + b2_ref[...]
    )
    o_ref[...] = jnp.abs(y).astype(o_ref.dtype)


def prepare_fcn_params(w1, b1, w2, b2):
    """One-time param prep (hoisted out of the per-call forward path)."""
    return (
        w1.astype(jnp.bfloat16),
        b1.astype(jnp.float32).reshape(1, -1),
        w2.astype(jnp.bfloat16),
        b2.astype(jnp.float32).reshape(1, -1),
    )


def fcn_forward(x, w1, b1, w2, b2, *, tile_b=512, out_dtype=jnp.float32):
    """Forward pass of FCN.

    x : (B, F)
    w1: (F, 64)   (stored transposed vs. PyTorch's (out, in))
    b1: (1, 64)
    w2: (64, 1600)
    b2: (1, 1600)
    returns (B, 1600) in `out_dtype` (float32 by default, bf16 optional).
    """
    B, F = x.shape
    h1 = w1.shape[1]
    h2 = w2.shape[1]

    # Trace-time no-ops when params come from prepare_fcn_params().
    w1 = w1 if w1.dtype == jnp.bfloat16 else w1.astype(jnp.bfloat16)
    w2 = w2 if w2.dtype == jnp.bfloat16 else w2.astype(jnp.bfloat16)
    b1 = b1 if b1.dtype == jnp.float32 else b1.astype(jnp.float32)
    b2 = b2 if b2.dtype == jnp.float32 else b2.astype(jnp.float32)

    # Batch tile: multiple of 8 sublanes, capped by tile_b; split into >= 2
    # grid steps when the batch allows so both v7x TensorCores get work
    # (harmless on single-TC v5e / v6e).
    tile = max(8, min(_round_up(tile_b, 8), _round_up(B, 8)))
    if _round_up(B, 8) >= 16:
        tile = min(tile, max(8, _round_up(-(-B // 2), 8)))

    grid = (pl.cdiv(B, tile),)  # uneven last tile handled by Pallas masking

    return pl.pallas_call(
        _fcn_kernel,
        out_shape=jax.ShapeDtypeStruct((B, h2), out_dtype),
        grid=grid,
        in_specs=[
            pl.BlockSpec((tile, F), lambda i: (i, 0)),   # x tile (pipelined)
            pl.BlockSpec((F, h1), lambda i: (0, 0)),     # W1 (VMEM-resident)
            pl.BlockSpec((1, h1), lambda i: (0, 0)),     # b1 (resident)
            pl.BlockSpec((h1, h2), lambda i: (0, 0)),    # W2 (resident)
            pl.BlockSpec((1, h2), lambda i: (0, 0)),     # b2 (resident)
        ],
        out_specs=pl.BlockSpec((tile, h2), lambda i: (i, 0)),
        compiler_params=pltpu.CompilerParams(
            dimension_semantics=("parallel",),
            vmem_limit_bytes=32 * 1024 * 1024,
        ),
    )(x, w1, b1, w2, b2)


def init_fcn_params(key, input_size, h1=H1, h2=H2):
    """Deterministic init mimicking torch.nn.Linear default (U[-1/sqrt(fan_in), +])."""
    k1, k2, k3, k4 = jax.random.split(key, 4)
    bound1 = 1.0 / jnp.sqrt(jnp.float32(input_size))
    bound2 = 1.0 / jnp.sqrt(jnp.float32(h1))
    # Stored transposed relative to PyTorch's (out, in) layout.
    w1 = jax.random.uniform(k1, (input_size, h1), jnp.float32, -bound1, bound1)
    b1 = jax.random.uniform(k2, (1, h1), jnp.float32, -bound1, bound1)
    w2 = jax.random.uniform(k3, (h1, h2), jnp.float32, -bound2, bound2)
    b2 = jax.random.uniform(k4, (1, h2), jnp.float32, -bound2, bound2)
    return w1, b1, w2, b2


def _ref_f32(x, w1, b1, w2, b2):
    return jnp.abs(jnp.tanh(x @ w1 + b1) @ w2 + b2)


def _ref_bf16(x, w1, b1, w2, b2):
    h = jnp.tanh(
        jnp.dot(x.astype(jnp.bfloat16), w1.astype(jnp.bfloat16),
                preferred_element_type=jnp.float32) + b1)
    y = jnp.dot(h.astype(jnp.bfloat16), w2.astype(jnp.bfloat16),
                preferred_element_type=jnp.float32) + b2
    return jnp.abs(y)


if __name__ == "__main__":
    key = jax.random.PRNGKey(0)
    kx, kx2, kp = jax.random.split(key, 3)

    input_size = 32  # FCN(input_size=32)
    w1, b1, w2, b2 = init_fcn_params(kp, input_size)
    p_w1, p_b1, p_w2, p_b2 = prepare_fcn_params(w1, b1, w2, b2)

    # --- small batch (single tile, no padding / no slicing anywhere) ---
    batch = 8
    x = jax.random.normal(kx, (batch, input_size), jnp.float32)
    out = jax.block_until_ready(fcn_forward(x, p_w1, p_b1, p_w2, p_b2))
    assert out.shape == (batch, H2), out.shape
    assert out.dtype == jnp.float32
    # Matches bf16-weight reference tightly, f32 reference within bf16 error.
    assert jnp.allclose(out, _ref_bf16(x, w1, b1, w2, b2), atol=2e-3, rtol=2e-3)
    assert jnp.allclose(out, _ref_f32(x, w1, b1, w2, b2), atol=3e-2, rtol=3e-2)

    # --- larger batch: multi-tile grid with an uneven final tile (B=200, tile=64) ---
    batch2 = 200
    x2 = jax.random.normal(kx2, (batch2, input_size), jnp.float32)
    out2 = jax.block_until_ready(
        fcn_forward(x2, p_w1, p_b1, p_w2, p_b2, tile_b=64))
    assert out2.shape == (batch2, H2), out2.shape
    assert jnp.allclose(out2, _ref_f32(x2, w1, b1, w2, b2), atol=3e-2, rtol=3e-2)

    # --- optional bf16 output (halves output HBM traffic) ---
    out3 = jax.block_until_ready(
        fcn_forward(x, p_w1, p_b1, p_w2, p_b2, out_dtype=jnp.bfloat16))
    assert out3.shape == (batch, H2) and out3.dtype == jnp.bfloat16
    assert jnp.allclose(out3.astype(jnp.float32), _ref_f32(x, w1, b1, w2, b2),
                        atol=5e-2, rtol=5e-2)

    print("KERNEL_OK")
</pallas_src>

<mosaic_0001>
module attributes {stable_mosaic.version = 11 : i64} {
  func.func @_fcn_kernel(%arg0: i32, %arg1: memref<8x32xf32, #tpu.memory_space<vmem>>, %arg2: memref<32x64xbf16, #tpu.memory_space<vmem>>, %arg3: memref<1x64xf32, #tpu.memory_space<vmem>>, %arg4: memref<64x1600xbf16, #tpu.memory_space<vmem>>, %arg5: memref<1x1600xf32, #tpu.memory_space<vmem>>, %arg6: memref<8x1600xf32, #tpu.memory_space<vmem>>) attributes {dimension_semantics = [#tpu.dimension_semantics<parallel>], iteration_bounds = array<i64: 1>, scalar_prefetch = 0 : i64, scratch_operands = 0 : i64, tpu.core_type = #tpu.core_type<tc>, window_params = [{transform_indices = @transform_0, window_bounds = array<i64: 8, 32>}, {pipeline_mode = #tpu.pipeline_mode<synchronous>, transform_indices = @transform_1, window_bounds = array<i64: 32, 64>}, {pipeline_mode = #tpu.pipeline_mode<synchronous>, transform_indices = @transform_2, window_bounds = array<i64: 1, 64>}, {pipeline_mode = #tpu.pipeline_mode<synchronous>, transform_indices = @transform_3, window_bounds = array<i64: 64, 1600>}, {pipeline_mode = #tpu.pipeline_mode<synchronous>, transform_indices = @transform_4, window_bounds = array<i64: 1, 1600>}, {transform_indices = @transform_5, window_bounds = array<i64: 8, 1600>}]} {
    %c0 = arith.constant 0 : index
    %c0_0 = arith.constant 0 : index
    %0 = vector.load %arg1[%c0, %c0_0] : memref<8x32xf32, #tpu.memory_space<vmem>>, vector<8x32xf32>
    %1 = arith.truncf %0 : vector<8x32xf32> to vector<8x32xbf16>
    %c0_1 = arith.constant 0 : index
    %c0_2 = arith.constant 0 : index
    %2 = vector.load %arg2[%c0_1, %c0_2] : memref<32x64xbf16, #tpu.memory_space<vmem>>, vector<32x64xbf16>
    %cst = arith.constant dense<0.000000e+00> : vector<8x64xf32>
    %3 = tpu.matmul %1, %2, %cst {dimension_numbers = #tpu.dot_dimension_numbers<[1], [0], [0], [1], [0, 0, 1, 1], [], []>} : vector<8x32xbf16>, vector<32x64xbf16>, vector<8x64xf32> -> vector<8x64xf32>
    %c0_3 = arith.constant 0 : index
    %c0_4 = arith.constant 0 : index
    %4 = vector.load %arg3[%c0_3, %c0_4] : memref<1x64xf32, #tpu.memory_space<vmem>>, vector<1x64xf32>
    %5 = vector.broadcast %4 : vector<1x64xf32> to vector<8x64xf32>
    %6 = arith.addf %3, %5 : vector<8x64xf32>
    %7 = math.tanh %6 : vector<8x64xf32>
    %8 = arith.truncf %7 : vector<8x64xf32> to vector<8x64xbf16>
    %c0_5 = arith.constant 0 : index
    %c0_6 = arith.constant 0 : index
    %9 = vector.load %arg4[%c0_5, %c0_6] : memref<64x1600xbf16, #tpu.memory_space<vmem>>, vector<64x1600xbf16>
    %cst_7 = arith.constant dense<0.000000e+00> : vector<8x1600xf32>
    %10 = tpu.matmul %8, %9, %cst_7 {dimension_numbers = #tpu.dot_dimension_numbers<[1], [0], [0], [1], [0, 0, 1, 1], [], []>} : vector<8x64xbf16>, vector<64x1600xbf16>, vector<8x1600xf32> -> vector<8x1600xf32>
    %c0_8 = arith.constant 0 : index
    %c0_9 = arith.constant 0 : index
    %11 = vector.load %arg5[%c0_8, %c0_9] : memref<1x1600xf32, #tpu.memory_space<vmem>>, vector<1x1600xf32>
    %12 = vector.broadcast %11 : vector<1x1600xf32> to vector<8x1600xf32>
    %13 = arith.addf %10, %12 : vector<8x1600xf32>
    %14 = math.absf %13 : vector<8x1600xf32>
    %c0_10 = arith.constant 0 : index
    %c0_11 = arith.constant 0 : index
    %15 = vector.load %arg6[%c0_10, %c0_11] : memref<8x1600xf32, #tpu.memory_space<vmem>>, vector<8x1600xf32>
    tpu.vector_store %arg6[%c0_10, %c0_11], %14 {strides = array<i32>} : memref<8x1600xf32, #tpu.memory_space<vmem>>, vector<8x1600xf32>,
    return
  }
  func.func @transform_0(%arg0: i32) -> (i32, i32) {
    %c0_i32 = arith.constant 0 : i32
    %c0_i32_0 = arith.constant 0 : i32
    return %arg0, %c0_i32 : i32, i32
  }
  func.func @transform_1(%arg0: i32) -> (i32, i32) {
    %c0_i32 = arith.constant 0 : i32
    %c0_i32_0 = arith.constant 0 : i32
    %c0_i32_1 = arith.constant 0 : i32
    return %c0_i32, %c0_i32_0 : i32, i32
  }
  func.func @transform_2(%arg0: i32) -> (i32, i32) {
    %c0_i32 = arith.constant 0 : i32
    %c0_i32_0 = arith.constant 0 : i32
    %c0_i32_1 = arith.constant 0 : i32
    return %c0_i32, %c0_i32_0 : i32, i32
  }
  func.func @transform_3(%arg0: i32) -> (i32, i32) {
    %c0_i32 = arith.constant 0 : i32
    %c0_i32_0 = arith.constant 0 : i32
    %c0_i32_1 = arith.constant 0 : i32
    return %c0_i32, %c0_i32_0 : i32, i32
  }
  func.func @transform_4(%arg0: i32) -> (i32, i32) {
    %c0_i32 = arith.constant 0 : i32
    %c0_i32_0 = arith.constant 0 : i32
    %c0_i32_1 = arith.constant 0 : i32
    return %c0_i32, %c0_i32_0 : i32, i32
  }
  func.func @transform_5(%arg0: i32) -> (i32, i32) {
    %c0_i32 = arith.constant 0 : i32
    %c0_i32_0 = arith.constant 0 : i32
    return %arg0, %c0_i32 : i32, i32
  }
}

</mosaic_0001>

<llo_original>
// kernel: tpu_custom_call.1
$region0: #{tpu_custom_call.1}
  #allocation0 [shape = 'u32[]', space=smem, size = 0x4, offset = 0x4, fixed_abs, tag = 'smem constant byte address 0x4 - core index']
  #allocation1 [shape = 'u32[144,128]{1,0:T(1,128)}', space=vmem, size = 0x12000, scoped, tag = 'internal scratch']
  %s0 = inlined_call_operand.hbm [shape: f32[8,32], index: 0, kind: input, shape index: {}]
  %s1 = inlined_call_operand.hbm [shape: bf16[32,64], index: 1, kind: input, shape index: {}]
  %s2 = inlined_call_operand.vmem [shape: f32[1,64], index: 2, kind: input, shape index: {}]
  %s3 = inlined_call_operand.hbm [shape: bf16[64,1600], index: 3, kind: input, shape index: {}]
  %s4 = inlined_call_operand.vmem [shape: f32[1,1600], index: 4, kind: input, shape index: {}]
  %s5 = inlined_call_operand.hbm [shape: f32[8,1600], index: 5, kind: output, shape index: {}]
  %s6 = sld [smem:[#allocation0]]
  $region42: #{tpu_custom_call.1} parent=0
    _
  %s8 = ssub.s32 1, %s6
  %s9 = scalar_select 0, %s8, %s6
  $region1: #{tpu_custom_call.1} parent=0
    #allocation2 [shape = 'u8[4096]{0}', space=vmem, size = 0x1000, scoped, tag = 'input window, operand 0, single buffered']
    #allocation3 [shape = 's32[1]{0}', space=sflag, size = 0x4, scoped, tag = 'scoped memory for tpu_custom_call.1']
    #allocation4 [shape = 's32[1]{0}', space=sflag, size = 0x4, scoped, tag = 'scoped memory for tpu_custom_call.1']
    #allocation5 [shape = 'u8[8192]{0}', space=vmem, size = 0x2000, scoped, tag = 'input window, operand 1, single buffered']
    #allocation6 [shape = 's32[1]{0}', space=sflag, size = 0x4, scoped, tag = 'scoped memory for tpu_custom_call.1']
    #allocation7 [shape = 'u8[212992]{0}', space=vmem, size = 0x34000, scoped, tag = 'input window, operand 3, single buffered']
    #allocation8 [shape = 'u8[53248]{0}', space=vmem, size = 0xd000, scoped, tag = 'output window, operand 0, single buffered']
    %10 = vsyncpa [#allocation3], 0
    %11 = vsyncpa [#allocation6], 0
    %12 = vsyncpa [#allocation4], 0
    // Predicated region
    $region2: #{tpu_custom_call.1} parent=1 // pred_check
      _
    $region3: #{tpu_custom_call.1} parent=1 // pred_check_branch
      %14 = sbr.rel (0) target = $region5
    $region4: #{tpu_custom_call.1} parent=1 // pred_region
      %s16 = ssub.s32 128, 128
      %17 = vsyncadd [#allocation3], %s16
      %s19 = sshll.u32 [#allocation2], 4
      %s20 = int_to_ptr.vmem [resolvable:$true] %s19
      %22 = dma.hbm_to_vmem [thread:$0]  %s0, 128, %s20, [#allocation3]
    $region5: #{tpu_custom_call.1} parent=1 // pred_fallthru
      _
    // Predicated region
    $region6: #{tpu_custom_call.1} parent=1 // pred_check
      _
    $region7: #{tpu_custom_call.1} parent=1 // pred_check_branch
      %24 = sbr.rel (0) target = $region9
    $region8: #{tpu_custom_call.1} parent=1 // pred_region
      %s26 = ssub.s32 256, 256
      %27 = vsyncadd [#allocation6], %s26
      %s28 = sshll.u32 [#allocation5], 4
      %s29 = int_to_ptr.vmem [resolvable:$true] %s28
      %34 = dma.hbm_to_vmem [thread:$0]  %s1, 256, %s29, [#allocation6], 64, 64, 4
    $region9: #{tpu_custom_call.1} parent=1 // pred_fallthru
      _
    // Predicated region
    $region10: #{tpu_custom_call.1} parent=1 // pred_check
      _
    $region11: #{tpu_custom_call.1} parent=1 // pred_check_branch
      %36 = sbr.rel (0) target = $region13
    $region12: #{tpu_custom_call.1} parent=1 // pred_region
      _
    $region13: #{tpu_custom_call.1} parent=1 // pred_fallthru
      _
    // Predicated region
    $region14: #{tpu_custom_call.1} parent=1 // pred_check
      _
    $region15: #{tpu_custom_call.1} parent=1 // pred_check_branch
      %38 = sbr.rel (0) target = $region17
    $region16: #{tpu_custom_call.1} parent=1 // pred_region
      %s40 = ssub.s32 6656, 6656
      %41 = vsyncadd [#allocation6], %s40
      %s42 = sshll.u32 [#allocation7], 4
      %s43 = int_to_ptr.vmem [resolvable:$true] %s42
      %48 = dma.hbm_to_vmem [thread:$0]  %s3, 6656, %s43, [#allocation6], 832, 832, 52
    $region17: #{tpu_custom_call.1} parent=1 // pred_fallthru
      _
    // Predicated region
    $region18: #{tpu_custom_call.1} parent=1 // pred_check
      _
    $region19: #{tpu_custom_call.1} parent=1 // pred_check_branch
      %50 = sbr.rel (0) target = $region21
    $region20: #{tpu_custom_call.1} parent=1 // pred_region
      _
    $region21: #{tpu_custom_call.1} parent=1 // pred_fallthru
      _
    // Predicated region
    $region22: #{tpu_custom_call.1} parent=1 // pred_check
      _
    $region23: #{tpu_custom_call.1} parent=1 // pred_check_branch
      %52 = sbr.rel (0) target = $region25
    $region24: #{tpu_custom_call.1} parent=1 // pred_region
      %53 = dma.done [#allocation3], 128
    $region25: #{tpu_custom_call.1} parent=1 // pred_fallthru
      _
    // Predicated region
    $region26: #{tpu_custom_call.1} parent=1 // pred_check
      _
    $region27: #{tpu_custom_call.1} parent=1 // pred_check_branch
      %55 = sbr.rel (0) target = $region29
    $region28: #{tpu_custom_call.1} parent=1 // pred_region
      %56 = dma.done [#allocation6], 256
    $region29: #{tpu_custom_call.1} parent=1 // pred_fallthru
      _
    // Predicated region
    $region30: #{tpu_custom_call.1} parent=1 // pred_check
      _
    $region31: #{tpu_custom_call.1} parent=1 // pred_check_branch
      %58 = sbr.rel (0) target = $region33
    $region32: #{tpu_custom_call.1} parent=1 // pred_region
      %59 = dma.done [#allocation6], 6656
    $region33: #{tpu_custom_call.1} parent=1 // pred_fallthru
      _
    %v61 = vld [vmem:[#allocation2] sm:$0xff]
    %v62 = vpack.c.bf16 %v61, %v61
    %v63 = vld [vmem:[#allocation5] sm:$0xf]
    %v64 = vld [vmem:[#allocation5 + $0x4] sm:$0xf]
    %v65 = vld [vmem:[#allocation5 + $0x8] sm:$0xf]
    %v66 = vld [vmem:[#allocation5 + $0xc] sm:$0xf]
    %v67 = vld [vmem:[%s2] sm:$0x1]
    %v69 = vlaneseq
    %v70 = vshrl.u32 %v69, 7
    %v71 = vsub.s32 0, %v70
    %v72 = vrot.slane %v67, %v71
    %v78 = vunpack.c.l.b16 %v63
    %v79 = vunpack.c.l.b16 %v64
    %v80 = vunpack.c.l.b16 %v65
    %v81 = vunpack.c.l.b16 %v66
    %v82 = vpack.c.b16 %v79, %v78
    %v83 = vpack.c.b16 %v81, %v80
    %vm86 = vcmask 261120
    %v88 = vsel %vm86, %v62, 0
    %90 = vmatprep.subr.bf16.mxu0 0
    %91 = vmatpush1.bf16.msra.mxu0 %v82
    %92 = vmatprep.subr.bf16.mxu0 0
    %93 = vmatpush1.bf16.msra.mxu0 %v83
    %94 = vmatprep.subr.bf16.mxu0 0
    %95 = vmatpush1.bf16.msra.mxu0 0
    %96 = vmatprep.subr.bf16.mxu0 0
    %97 = vmatpush1.bf16.msra.mxu0 0
    %98 = vmatprep.subr.bf16.mxu0 0
    %99 = vmatpush1.bf16.msra.mxu0 0
    %100 = vmatprep.subr.bf16.mxu0 0
    %101 = vmatpush1.bf16.msra.mxu0 0
    %102 = vmatprep.subr.bf16.mxu0 0
    %103 = vmatpush1.bf16.msra.mxu0 0
    %104 = vmatprep.subr.bf16.mxu0 0
    %105 = vmatpush1.bf16.msra.mxu0 0
    %106 = vmatprep.subr.bf16.mxu0 0
    %107 = vmatpush1.bf16.msra.mxu0 0
    %108 = vmatprep.subr.bf16.mxu0 0
    %109 = vmatpush1.bf16.msra.mxu0 0
    %110 = vmatprep.subr.bf16.mxu0 0
    %111 = vmatpush1.bf16.msra.mxu0 0
    %112 = vmatprep.subr.bf16.mxu0 0
    %113 = vmatpush1.bf16.msra.mxu0 0
    %114 = vmatprep.subr.bf16.mxu0 0
    %115 = vmatpush1.bf16.msra.mxu0 0
    %116 = vmatprep.subr.bf16.mxu0 0
    %117 = vmatpush1.bf16.msra.mxu0 0
    %118 = vmatprep.subr.bf16.mxu0 0
    %119 = vmatpush1.bf16.msra.mxu0 0
    %120 = vmatprep.subr.bf16.mxu0 0
    %121 = vmatpush1.bf16.msra.mxu0 0
    %122 = vmatprep.mubr.bf16.mxu0 0
    %123 = vmatmul.mubr.bf16.gmra.mrb[0].mxu0 %v88
    %v124 = vpop.f32.mrb[0].mxu0
    %v125 = vadd.f32 %v72, %v124
    %v126 = vpop.f32.mrb[0].mxu0
    %v127 = vpop.f32.mrb[0].mxu0
    %v128 = vpop.f32.mrb[0].mxu0
    %129 = vdwg.mxu0
    %v130 = vtanh.pop %v125
    %v131 = vpack.c.bf16 %v130, %v130
    %v132 = vld [vmem:[#allocation7] sm:$0xff]
    %v133 = vld [vmem:[#allocation7 + $0x8] sm:$0xff]
    %v134 = vld [vmem:[#allocation7 + $0x10] sm:$0xff]
    %v135 = vld [vmem:[#allocation7 + $0x18] sm:$0xff]
    %v136 = vld [vmem:[#allocation7 + $0x20] sm:$0xff]
    %v137 = vld [vmem:[#allocation7 + $0x28] sm:$0xff]
    %v138 = vld [vmem:[#allocation7 + $0x30] sm:$0xf]
    %v139 = vld [vmem:[#allocation7 + $0x34] sm:$0xff]
    %v140 = vld [vmem:[#allocation7 + $0x3c] sm:$0xff]
    %v141 = vld [vmem:[#allocation7 + $0x44] sm:$0xff]
    %v142 = vld [vmem:[#allocation7 + $0x4c] sm:$0xff]
    %v143 = vld [vmem:[#allocation7 + $0x54] sm:$0xff]
    %v144 = vld [vmem:[#allocation7 + $0x5c] sm:$0xff]
    %v145 = vld [vmem:[#allocation7 + $0x64] sm:$0xf]
    %v146 = vld [vmem:[#allocation7 + $0x68] sm:$0xff]
    %v147 = vld [vmem:[#allocation7 + $0x70] sm:$0xff]
    %v148 = vld [vmem:[#allocation7 + $0x78] sm:$0xff]
    %v149 = vld [vmem:[#allocation7 + $0x80] sm:$0xff]
    %v150 = vld [vmem:[#allocation7 + $0x88] sm:$0xff]
    %v151 = vld [vmem:[#allocation7 + $0x90] sm:$0xff]
    %v152 = vld [vmem:[#allocation7 + $0x98] sm:$0xf]
    %v153 = vld [vmem:[#allocation7 + $0x9c] sm:$0xff]
    %v154 = vld [vmem:[#allocation7 + $0xa4] sm:$0xff]
    %v155 = vld [vmem:[#allocation7 + $0xac] sm:$0xff]
    %v156 = vld [vmem:[#allocation7 + $0xb4] sm:$0xff]
    %v157 = vld [vmem:[#allocation7 + $0xbc] sm:$0xff]
    %v158 = vld [vmem:[#allocation7 + $0xc4] sm:$0xff]
    %v159 = vld [vmem:[#allocation7 + $0xcc] sm:$0xf]
    %v160 = vld [vmem:[#allocation7 + $0xd0] sm:$0xff]
    %v161 = vld [vmem:[#allocation7 + $0xd8] sm:$0xff]
    %v162 = vld [vmem:[#allocation7 + $0xe0] sm:$0xff]
    %v163 = vld [vmem:[#allocation7 + $0xe8] sm:$0xff]
    %v164 = vld [vmem:[#allocation7 + $0xf0] sm:$0xff]
    %v165 = vld [vmem:[#allocation7 + $0xf8] sm:$0xff]
    %v166 = vld [vmem:[#allocation7 + $0x100] sm:$0xf]
    %v167 = vld [vmem:[#allocation7 + $0x104] sm:$0xff]
    %v168 = vld [vmem:[#allocation7 + $0x10c] sm:$0xff]
    %v169 = vld [vmem:[#allocation7 + $0x114] sm:$0xff]
    %v170 = vld [vmem:[#allocation7 + $0x11c] sm:$0xff]
    %v171 = vld [vmem:[#allocation7 + $0x124] sm:$0xff]
    %v172 = vld [vmem:[#allocation7 + $0x12c] sm:$0xff]
    %v173 = vld [vmem:[#allocation7 + $0x134] sm:$0xf]
    %v174 = vld [vmem:[#allocation7 + $0x138] sm:$0xff]
    %v175 = vld [vmem:[#allocation7 + $0x140] sm:$0xff]
    %v176 = vld [vmem:[#allocation7 + $0x148] sm:$0xff]
    %v177 = vld [vmem:[#allocation7 + $0x150] sm:$0xff]
    %v178 = vld [vmem:[#allocation7 + $0x158] sm:$0xff]
    %v179 = vld [vmem:[#allocation7 + $0x160] sm:$0xff]
    %v180 = vld [vmem:[#allocation7 + $0x168] sm:$0xf]
    %v181 = vld [vmem:[#allocation7 + $0x16c] sm:$0xff]
    %v182 = vld [vmem:[#allocation7 + $0x174] sm:$0xff]
    %v183 = vld [vmem:[#allocation7 + $0x17c] sm:$0xff]
    %v184 = vld [vmem:[#allocation7 + $0x184] sm:$0xff]
    %v185 = vld [vmem:[#allocation7 + $0x18c] sm:$0xff]
    %v186 = vld [vmem:[#allocation7 + $0x194] sm:$0xff]
    %v187 = vld [vmem:[#allocation7 + $0x19c] sm:$0xf]
    %v188 = vld [vmem:[%s4] sm:$0xff]
    %v189 = vld [vmem:[%s4 + $0x8] sm:$0x1f]
    %v192 = vlaneseq
    %v193 = vshrl.u32 %v192, 7
    %v194 = vsub.s32 0, %v193
    %v195 = vrot.slane %v188, %v194
    %v196 = vlaneseq
    %v197 = vshrl.u32 %v196, 7
    %v198 = vsub.s32 1, %v197
    %v199 = vrot.slane %v188, %v198
    %v200 = vlaneseq
    %v201 = vshrl.u32 %v200, 7
    %v202 = vsub.s32 2, %v201
    %v203 = vrot.slane %v188, %v202
    %v204 = vlaneseq
    %v205 = vshrl.u32 %v204, 7
    %v206 = vsub.s32 3, %v205
    %v207 = vrot.slane %v188, %v206
    %v208 = vlaneseq
    %v209 = vshrl.u32 %v208, 7
    %v210 = vsub.s32 4, %v209
    %v211 = vrot.slane %v188, %v210
    %v212 = vlaneseq
    %v213 = vshrl.u32 %v212, 7
    %v214 = vsub.s32 5, %v213
    %v215 = vrot.slane %v188, %v214
    %v216 = vlaneseq
    %v217 = vshrl.u32 %v216, 7
    %v218 = vsub.s32 6, %v217
    %v219 = vrot.slane %v188, %v218
    %v220 = vlaneseq
    %v221 = vshrl.u32 %v220, 7
    %v222 = vsub.s32 7, %v221
    %v223 = vrot.slane %v188, %v222
    %v224 = vlaneseq
    %v225 = vshrl.u32 %v224, 7
    %v226 = vsub.s32 0, %v225
    %v227 = vrot.slane %v189, %v226
    %v228 = vlaneseq
    %v229 = vshrl.u32 %v228, 7
    %v230 = vsub.s32 1, %v229
    %v231 = vrot.slane %v189, %v230
    %v232 = vlaneseq
    %v233 = vshrl.u32 %v232, 7
    %v234 = vsub.s32 2, %v233
    %v235 = vrot.slane %v189, %v234
    %v236 = vlaneseq
    %v237 = vshrl.u32 %v236, 7
    %v238 = vsub.s32 3, %v237
    %v239 = vrot.slane %v189, %v238
    %v240 = vlaneseq
    %v241 = vshrl.u32 %v240, 7
    %v242 = vsub.s32 4, %v241
    %v243 = vrot.slane %v189, %v242
    %v313 = vunpack.c.l.b16 %v132
    %v314 = vunpack.c.h.b16 %v132
    %v315 = vunpack.c.l.b16 %v133
    %v316 = vunpack.c.h.b16 %v133
    %v317 = vunpack.c.l.b16 %v134
    %v318 = vunpack.c.h.b16 %v134
    %v319 = vunpack.c.l.b16 %v135
    %v320 = vunpack.c.h.b16 %v135
    %v321 = vunpack.c.l.b16 %v136
    %v322 = vunpack.c.h.b16 %v136
    %v323 = vunpack.c.l.b16 %v137
    %v324 = vunpack.c.h.b16 %v137
    %v325 = vunpack.c.l.b16 %v138
    %v326 = vunpack.c.l.b16 %v139
    %v327 = vunpack.c.h.b16 %v139
    %v328 = vunpack.c.l.b16 %v140
    %v329 = vunpack.c.h.b16 %v140
    %v330 = vunpack.c.l.b16 %v141
    %v331 = vunpack.c.h.b16 %v141
    %v332 = vunpack.c.l.b16 %v142
    %v333 = vunpack.c.h.b16 %v142
    %v334 = vunpack.c.l.b16 %v143
    %v335 = vunpack.c.h.b16 %v143
    %v336 = vunpack.c.l.b16 %v144
    %v337 = vunpack.c.h.b16 %v144
    %v338 = vunpack.c.l.b16 %v145
    %v339 = vunpack.c.l.b16 %v146
    %v340 = vunpack.c.h.b16 %v146
    %v341 = vunpack.c.l.b16 %v147
    %v342 = vunpack.c.h.b16 %v147
    %v343 = vunpack.c.l.b16 %v148
    %v344 = vunpack.c.h.b16 %v148
    %v345 = vunpack.c.l.b16 %v149
    %v346 = vunpack.c.h.b16 %v149
    %v347 = vunpack.c.l.b16 %v150
    %v348 = vunpack.c.h.b16 %v150
    %v349 = vunpack.c.l.b16 %v151
    %v350 = vunpack.c.h.b16 %v151
    %v351 = vunpack.c.l.b16 %v152
    %v352 = vunpack.c.l.b16 %v153
    %v353 = vunpack.c.h.b16 %v153
    %v354 = vunpack.c.l.b16 %v154
    %v355 = vunpack.c.h.b16 %v154
    %v356 = vunpack.c.l.b16 %v155
    %v357 = vunpack.c.h.b16 %v155
    %v358 = vunpack.c.l.b16 %v156
    %v359 = vunpack.c.h.b16 %v156
    %v360 = vunpack.c.l.b16 %v157
    %v361 = vunpack.c.h.b16 %v157
    %v362 = vunpack.c.l.b16 %v158
    %v363 = vunpack.c.h.b16 %v158
    %v364 = vunpack.c.l.b16 %v159
    %v365 = vunpack.c.l.b16 %v160
    %v366 = vunpack.c.h.b16 %v160
    %v367 = vunpack.c.l.b16 %v161
    %v368 = vunpack.c.h.b16 %v161
    %v369 = vunpack.c.l.b16 %v162
    %v370 = vunpack.c.h.b16 %v162
    %v371 = vunpack.c.l.b16 %v163
    %v372 = vunpack.c.h.b16 %v163
    %v373 = vunpack.c.l.b16 %v164
    %v374 = vunpack.c.h.b16 %v164
    %v375 = vunpack.c.l.b16 %v165
    %v376 = vunpack.c.h.b16 %v165
    %v377 = vunpack.c.l.b16 %v166
    %v378 = vunpack.c.l.b16 %v167
    %v379 = vunpack.c.h.b16 %v167
    %v380 = vunpack.c.l.b16 %v168
    %v381 = vunpack.c.h.b16 %v168
    %v382 = vunpack.c.l.b16 %v169
    %v383 = vunpack.c.h.b16 %v169
    %v384 = vunpack.c.l.b16 %v170
    %v385 = vunpack.c.h.b16 %v170
    %v386 = vunpack.c.l.b16 %v171
    %v387 = vunpack.c.h.b16 %v171
    %v388 = vunpack.c.l.b16 %v172
    %v389 = vunpack.c.h.b16 %v172
    %v390 = vunpack.c.l.b16 %v173
    %v391 = vunpack.c.l.b16 %v174
    %v392 = vunpack.c.h.b16 %v174
    %v393 = vunpack.c.l.b16 %v175
    %v394 = vunpack.c.h.b16 %v175
    %v395 = vunpack.c.l.b16 %v176
    %v396 = vunpack.c.h.b16 %v176
    %v397 = vunpack.c.l.b16 %v177
    %v398 = vunpack.c.h.b16 %v177
    %v399 = vunpack.c.l.b16 %v178
    %v400 = vunpack.c.h.b16 %v178
    %v401 = vunpack.c.l.b16 %v179
    %v402 = vunpack.c.h.b16 %v179
    %v403 = vunpack.c.l.b16 %v180
    %v404 = vunpack.c.l.b16 %v181
    %v405 = vunpack.c.h.b16 %v181
    %v406 = vunpack.c.l.b16 %v182
    %v407 = vunpack.c.h.b16 %v182
    %v408 = vunpack.c.l.b16 %v183
    %v409 = vunpack.c.h.b16 %v183
    %v410 = vunpack.c.l.b16 %v184
    %v411 = vunpack.c.h.b16 %v184
    %v412 = vunpack.c.l.b16 %v185
    %v413 = vunpack.c.h.b16 %v185
    %v414 = vunpack.c.l.b16 %v186
    %v415 = vunpack.c.h.b16 %v186
    %v416 = vunpack.c.l.b16 %v187
    %v417 = vpack.c.b16 %v326, %v313
    %v418 = vpack.c.b16 %v327, %v314
    %v419 = vpack.c.b16 %v328, %v315
    %v420 = vpack.c.b16 %v329, %v316
    %v421 = vpack.c.b16 %v330, %v317
    %v422 = vpack.c.b16 %v331, %v318
    %v423 = vpack.c.b16 %v332, %v319
    %v424 = vpack.c.b16 %v333, %v320
    %v425 = vpack.c.b16 %v334, %v321
    %v426 = vpack.c.b16 %v335, %v322
    %v427 = vpack.c.b16 %v336, %v323
    %v428 = vpack.c.b16 %v337, %v324
    %v429 = vpack.c.b16 %v338, %v325
    %v430 = vpack.c.b16 %v352, %v339
    %v431 = vpack.c.b16 %v353, %v340
    %v432 = vpack.c.b16 %v354, %v341
    %v433 = vpack.c.b16 %v355, %v342
    %v434 = vpack.c.b16 %v356, %v343
    %v435 = vpack.c.b16 %v357, %v344
    %v436 = vpack.c.b16 %v358, %v345
    %v437 = vpack.c.b16 %v359, %v346
    %v438 = vpack.c.b16 %v360, %v347
    %v439 = vpack.c.b16 %v361, %v348
    %v440 = vpack.c.b16 %v362, %v349
    %v441 = vpack.c.b16 %v363, %v350
    %v442 = vpack.c.b16 %v364, %v351
    %v443 = vpack.c.b16 %v378, %v365
    %v444 = vpack.c.b16 %v379, %v366
    %v445 = vpack.c.b16 %v380, %v367
    %v446 = vpack.c.b16 %v381, %v368
    %v447 = vpack.c.b16 %v382, %v369
    %v448 = vpack.c.b16 %v383, %v370
    %v449 = vpack.c.b16 %v384, %v371
    %v450 = vpack.c.b16 %v385, %v372
    %v451 = vpack.c.b16 %v386, %v373
    %v452 = vpack.c.b16 %v387, %v374
    %v453 = vpack.c.b16 %v388, %v375
    %v454 = vpack.c.b16 %v389, %v376
    %v455 = vpack.c.b16 %v390, %v377
    %v456 = vpack.c.b16 %v404, %v391
    %v457 = vpack.c.b16 %v405, %v392
    %v458 = vpack.c.b16 %v406, %v393
    %v459 = vpack.c.b16 %v407, %v394
    %v460 = vpack.c.b16 %v408, %v395
    %v461 = vpack.c.b16 %v409, %v396
    %v462 = vpack.c.b16 %v410, %v397
    %v463 = vpack.c.b16 %v411, %v398
    %v464 = vpack.c.b16 %v412, %v399
    %v465 = vpack.c.b16 %v413, %v400
    %v466 = vpack.c.b16 %v414, %v401
    %v467 = vpack.c.b16 %v415, %v402
    %v468 = vpack.c.b16 %v416, %v403
    %vm521 = vcmask 523264
    %v523 = vsel %vm521, %v131, 0
    %525 = vmatprep.subr.bf16.mxu0 %v418
    %526 = vmatpush1.bf16.msra.mxu0 %v417
    %527 = vmatprep.subr.bf16.mxu0 %v431
    %528 = vmatpush1.bf16.msra.mxu0 %v430
    %529 = vmatprep.subr.bf16.mxu0 %v444
    %530 = vmatpush1.bf16.msra.mxu0 %v443
    %531 = vmatprep.subr.bf16.mxu0 %v457
    %532 = vmatpush1.bf16.msra.mxu0 %v456
    %533 = vmatprep.subr.bf16.mxu0 0
    %534 = vmatpush1.bf16.msra.mxu0 0
    %535 = vmatprep.subr.bf16.mxu0 0
    %536 = vmatpush1.bf16.msra.mxu0 0
    %537 = vmatprep.subr.bf16.mxu0 0
    %538 = vmatpush1.bf16.msra.mxu0 0
    %539 = vmatprep.subr.bf16.mxu0 0
    %540 = vmatpush1.bf16.msra.mxu0 0
    %541 = vmatprep.subr.bf16.mxu0 0
    %542 = vmatpush1.bf16.msra.mxu0 0
    %543 = vmatprep.subr.bf16.mxu0 0
    %544 = vmatpush1.bf16.msra.mxu0 0
    %545 = vmatprep.subr.bf16.mxu0 0
    %546 = vmatpush1.bf16.msra.mxu0 0
    %547 = vmatprep.subr.bf16.mxu0 0
    %548 = vmatpush1.bf16.msra.mxu0 0
    %549 = vmatprep.subr.bf16.mxu0 0
    %550 = vmatpush1.bf16.msra.mxu0 0
    %551 = vmatprep.subr.bf16.mxu0 0
    %552 = vmatpush1.bf16.msra.mxu0 0
    %553 = vmatprep.subr.bf16.mxu0 0
    %554 = vmatpush1.bf16.msra.mxu0 0
    %555 = vmatprep.subr.bf16.mxu0 0
    %556 = vmatpush1.bf16.msra.mxu0 0
    %557 = vmatprep.mubr.bf16.mxu0 0
    %558 = vmatmul.mubr.bf16.gmra.mrb[0].mxu0 %v523
    %v559 = vpop.f32.mrb[0].mxu0
    %v560 = vadd.f32 %v195, %v559
    %v561 = vpop.f32.mrb[0].mxu0
    %v562 = vadd.f32 %v199, %v561
    %v563 = vpop.f32.mrb[0].mxu0
    %v564 = vpop.f32.mrb[0].mxu0
    %565 = vdwg.mxu0
    %566 = vmatprep.subr.bf16.mxu0 %v420
    %567 = vmatpush1.bf16.msra.mxu0 %v419
    %568 = vmatprep.subr.bf16.mxu0 %v433
    %569 = vmatpush1.bf16.msra.mxu0 %v432
    %570 = vmatprep.subr.bf16.mxu0 %v446
    %571 = vmatpush1.bf16.msra.mxu0 %v445
    %572 = vmatprep.subr.bf16.mxu0 %v459
    %573 = vmatpush1.bf16.msra.mxu0 %v458
    %574 = vmatprep.subr.bf16.mxu0 0
    %575 = vmatpush1.bf16.msra.mxu0 0
    %576 = vmatprep.subr.bf16.mxu0 0
    %577 = vmatpush1.bf16.msra.mxu0 0
    %578 = vmatprep.subr.bf16.mxu0 0
    %579 = vmatpush1.bf16.msra.mxu0 0
    %580 = vmatprep.subr.bf16.mxu0 0
    %581 = vmatpush1.bf16.msra.mxu0 0
    %582 = vmatprep.subr.bf16.mxu0 0
    %583 = vmatpush1.bf16.msra.mxu0 0
    %584 = vmatprep.subr.bf16.mxu0 0
    %585 = vmatpush1.bf16.msra.mxu0 0
    %586 = vmatprep.subr.bf16.mxu0 0
    %587 = vmatpush1.bf16.msra.mxu0 0
    %588 = vmatprep.subr.bf16.mxu0 0
    %589 = vmatpush1.bf16.msra.mxu0 0
    %590 = vmatprep.subr.bf16.mxu0 0
    %591 = vmatpush1.bf16.msra.mxu0 0
    %592 = vmatprep.subr.bf16.mxu0 0
    %593 = vmatpush1.bf16.msra.mxu0 0
    %594 = vmatprep.subr.bf16.mxu0 0
    %595 = vmatpush1.bf16.msra.mxu0 0
    %596 = vmatprep.subr.bf16.mxu0 0
    %597 = vmatpush1.bf16.msra.mxu0 0
    %598 = vmatprep.mubr.bf16.mxu0 0
    %599 = vmatmul.mubr.bf16.gmra.mrb[0].mxu0 %v523
    %v600 = vpop.f32.mrb[0].mxu0
    %v601 = vadd.f32 %v203, %v600
    %v602 = vpop.f32.mrb[0].mxu0
    %v603 = vadd.f32 %v207, %v602
    %v604 = vpop.f32.mrb[0].mxu0
    %v605 = vpop.f32.mrb[0].mxu0
    %606 = vdwg.mxu0
    %607 = vmatprep.subr.bf16.mxu0 %v422
    %608 = vmatpush1.bf16.msra.mxu0 %v421
    %609 = vmatprep.subr.bf16.mxu0 %v435
    %610 = vmatpush1.bf16.msra.mxu0 %v434
    %611 = vmatprep.subr.bf16.mxu0 %v448
    %612 = vmatpush1.bf16.msra.mxu0 %v447
    %613 = vmatprep.subr.bf16.mxu0 %v461
    %614 = vmatpush1.bf16.msra.mxu0 %v460
    %615 = vmatprep.subr.bf16.mxu0 0
    %616 = vmatpush1.bf16.msra.mxu0 0
    %617 = vmatprep.subr.bf16.mxu0 0
    %618 = vmatpush1.bf16.msra.mxu0 0
    %619 = vmatprep.subr.bf16.mxu0 0
    %620 = vmatpush1.bf16.msra.mxu0 0
    %621 = vmatprep.subr.bf16.mxu0 0
    %622 = vmatpush1.bf16.msra.mxu0 0
    %623 = vmatprep.subr.bf16.mxu0 0
    %624 = vmatpush1.bf16.msra.mxu0 0
    %625 = vmatprep.subr.bf16.mxu0 0
    %626 = vmatpush1.bf16.msra.mxu0 0
    %627 = vmatprep.subr.bf16.mxu0 0
    %628 = vmatpush1.bf16.msra.mxu0 0
    %629 = vmatprep.subr.bf16.mxu0 0
    %630 = vmatpush1.bf16.msra.mxu0 0
    %631 = vmatprep.subr.bf16.mxu0 0
    %632 = vmatpush1.bf16.msra.mxu0 0
    %633 = vmatprep.subr.bf16.mxu0 0
    %634 = vmatpush1.bf16.msra.mxu0 0
    %635 = vmatprep.subr.bf16.mxu0 0
    %636 = vmatpush1.bf16.msra.mxu0 0
    %637 = vmatprep.subr.bf16.mxu0 0
    %638 = vmatpush1.bf16.msra.mxu0 0
    %639 = vmatprep.mubr.bf16.mxu0 0
    %640 = vmatmul.mubr.bf16.gmra.mrb[0].mxu0 %v523
    %v641 = vpop.f32.mrb[0].mxu0
    %v642 = vadd.f32 %v211, %v641
    %v643 = vpop.f32.mrb[0].mxu0
    %v644 = vadd.f32 %v215, %v643
    %v645 = vpop.f32.mrb[0].mxu0
    %v646 = vpop.f32.mrb[0].mxu0
    %647 = vdwg.mxu0
    %648 = vmatprep.subr.bf16.mxu0 %v424
    %649 = vmatpush1.bf16.msra.mxu0 %v423
    %650 = vmatprep.subr.bf16.mxu0 %v437
    %651 = vmatpush1.bf16.msra.mxu0 %v436
    %652 = vmatprep.subr.bf16.mxu0 %v450
    %653 = vmatpush1.bf16.msra.mxu0 %v449
    %654 = vmatprep.subr.bf16.mxu0 %v463
    %655 = vmatpush1.bf16.msra.mxu0 %v462
    %656 = vmatprep.subr.bf16.mxu0 0
    %657 = vmatpush1.bf16.msra.mxu0 0
    %658 = vmatprep.subr.bf16.mxu0 0
    %659 = vmatpush1.bf16.msra.mxu0 0
    %660 = vmatprep.subr.bf16.mxu0 0
    %661 = vmatpush1.bf16.msra.mxu0 0
    %662 = vmatprep.subr.bf16.mxu0 0
    %663 = vmatpush1.bf16.msra.mxu0 0
    %664 = vmatprep.subr.bf16.mxu0 0
    %665 = vmatpush1.bf16.msra.mxu0 0
    %666 = vmatprep.subr.bf16.mxu0 0
    %667 = vmatpush1.bf16.msra.mxu0 0
    %668 = vmatprep.subr.bf16.mxu0 0
    %669 = vmatpush1.bf16.msra.mxu0 0
    %670 = vmatprep.subr.bf16.mxu0 0
    %671 = vmatpush1.bf16.msra.mxu0 0
    %672 = vmatprep.subr.bf16.mxu0 0
    %673 = vmatpush1.bf16.msra.mxu0 0
    %674 = vmatprep.subr.bf16.mxu0 0
    %675 = vmatpush1.bf16.msra.mxu0 0
    %676 = vmatprep.subr.bf16.mxu0 0
    %677 = vmatpush1.bf16.msra.mxu0 0
    %678 = vmatprep.subr.bf16.mxu0 0
    %679 = vmatpush1.bf16.msra.mxu0 0
    %680 = vmatprep.mubr.bf16.mxu0 0
    %681 = vmatmul.mubr.bf16.gmra.mrb[0].mxu0 %v523
    %v682 = vpop.f32.mrb[0].mxu0
    %v683 = vadd.f32 %v219, %v682
    %v684 = vpop.f32.mrb[0].mxu0
    %v685 = vadd.f32 %v223, %v684
    %v686 = vpop.f32.mrb[0].mxu0
    %v687 = vpop.f32.mrb[0].mxu0
    %688 = vdwg.mxu0
    %689 = vmatprep.subr.bf16.mxu0 %v426
    %690 = vmatpush1.bf16.msra.mxu0 %v425
    %691 = vmatprep.subr.bf16.mxu0 %v439
    %692 = vmatpush1.bf16.msra.mxu0 %v438
    %693 = vmatprep.subr.bf16.mxu0 %v452
    %694 = vmatpush1.bf16.msra.mxu0 %v451
    %695 = vmatprep.subr.bf16.mxu0 %v465
    %696 = vmatpush1.bf16.msra.mxu0 %v464
    %697 = vmatprep.subr.bf16.mxu0 0
    %698 = vmatpush1.bf16.msra.mxu0 0
    %699 = vmatprep.subr.bf16.mxu0 0
    %700 = vmatpush1.bf16.msra.mxu0 0
    %701 = vmatprep.subr.bf16.mxu0 0
    %702 = vmatpush1.bf16.msra.mxu0 0
    %703 = vmatprep.subr.bf16.mxu0 0
    %704 = vmatpush1.bf16.msra.mxu0 0
    %705 = vmatprep.subr.bf16.mxu0 0
    %706 = vmatpush1.bf16.msra.mxu0 0
    %707 = vmatprep.subr.bf16.mxu0 0
    %708 = vmatpush1.bf16.msra.mxu0 0
    %709 = vmatprep.subr.bf16.mxu0 0
    %710 = vmatpush1.bf16.msra.mxu0 0
    %711 = vmatprep.subr.bf16.mxu0 0
    %712 = vmatpush1.bf16.msra.mxu0 0
    %713 = vmatprep.subr.bf16.mxu0 0
    %714 = vmatpush1.bf16.msra.mxu0 0
    %715 = vmatprep.subr.bf16.mxu0 0
    %716 = vmatpush1.bf16.msra.mxu0 0
    %717 = vmatprep.subr.bf16.mxu0 0
    %718 = vmatpush1.bf16.msra.mxu0 0
    %719 = vmatprep.subr.bf16.mxu0 0
    %720 = vmatpush1.bf16.msra.mxu0 0
    %721 = vmatprep.mubr.bf16.mxu0 0
    %722 = vmatmul.mubr.bf16.gmra.mrb[0].mxu0 %v523
    %v723 = vpop.f32.mrb[0].mxu0
    %v724 = vadd.f32 %v227, %v723
    %v725 = vpop.f32.mrb[0].mxu0
    %v726 = vadd.f32 %v231, %v725
    %v727 = vpop.f32.mrb[0].mxu0
    %v728 = vpop.f32.mrb[0].mxu0
    %729 = vdwg.mxu0
    %730 = vmatprep.subr.bf16.mxu0 %v428
    %731 = vmatpush1.bf16.msra.mxu0 %v427
    %732 = vmatprep.subr.bf16.mxu0 %v441
    %733 = vmatpush1.bf16.msra.mxu0 %v440
    %734 = vmatprep.subr.bf16.mxu0 %v454
    %735 = vmatpush1.bf16.msra.mxu0 %v453
    %736 = vmatprep.subr.bf16.mxu0 %v467
    %737 = vmatpush1.bf16.msra.mxu0 %v466
    %738 = vmatprep.subr.bf16.mxu0 0
    %739 = vmatpush1.bf16.msra.mxu0 0
    %740 = vmatprep.subr.bf16.mxu0 0
    %741 = vmatpush1.bf16.msra.mxu0 0
    %742 = vmatprep.subr.bf16.mxu0 0
    %743 = vmatpush1.bf16.msra.mxu0 0
    %744 = vmatprep.subr.bf16.mxu0 0
    %745 = vmatpush1.bf16.msra.mxu0 0
    %746 = vmatprep.subr.bf16.mxu0 0
    %747 = vmatpush1.bf16.msra.mxu0 0
    %748 = vmatprep.subr.bf16.mxu0 0
    %749 = vmatpush1.bf16.msra.mxu0 0
    %750 = vmatprep.subr.bf16.mxu0 0
    %751 = vmatpush1.bf16.msra.mxu0 0
    %752 = vmatprep.subr.bf16.mxu0 0
    %753 = vmatpush1.bf16.msra.mxu0 0
    %754 = vmatprep.subr.bf16.mxu0 0
    %755 = vmatpush1.bf16.msra.mxu0 0
    %756 = vmatprep.subr.bf16.mxu0 0
    %757 = vmatpush1.bf16.msra.mxu0 0
    %758 = vmatprep.subr.bf16.mxu0 0
    %759 = vmatpush1.bf16.msra.mxu0 0
    %760 = vmatprep.subr.bf16.mxu0 0
    %761 = vmatpush1.bf16.msra.mxu0 0
    %762 = vmatprep.mubr.bf16.mxu0 0
    %763 = vmatmul.mubr.bf16.gmra.mrb[0].mxu0 %v523
    %v764 = vpop.f32.mrb[0].mxu0
    %v765 = vadd.f32 %v235, %v764
    %v766 = vpop.f32.mrb[0].mxu0
    %v767 = vadd.f32 %v239, %v766
    %v768 = vpop.f32.mrb[0].mxu0
    %v769 = vpop.f32.mrb[0].mxu0
    %770 = vdwg.mxu0
    %771 = vmatprep.subr.bf16.mxu0 0
    %772 = vmatpush1.bf16.msra.mxu0 %v429
    %773 = vmatprep.subr.bf16.mxu0 0
    %774 = vmatpush1.bf16.msra.mxu0 %v442
    %775 = vmatprep.subr.bf16.mxu0 0
    %776 = vmatpush1.bf16.msra.mxu0 %v455
    %777 = vmatprep.subr.bf16.mxu0 0
    %778 = vmatpush1.bf16.msra.mxu0 %v468
    %779 = vmatprep.subr.bf16.mxu0 0
    %780 = vmatpush1.bf16.msra.mxu0 0
    %781 = vmatprep.subr.bf16.mxu0 0
    %782 = vmatpush1.bf16.msra.mxu0 0
    %783 = vmatprep.subr.bf16.mxu0 0
    %784 = vmatpush1.bf16.msra.mxu0 0
    %785 = vmatprep.subr.bf16.mxu0 0
    %786 = vmatpush1.bf16.msra.mxu0 0
    %787 = vmatprep.subr.bf16.mxu0 0
    %788 = vmatpush1.bf16.msra.mxu0 0
    %789 = vmatprep.subr.bf16.mxu0 0
    %790 = vmatpush1.bf16.msra.mxu0 0
    %791 = vmatprep.subr.bf16.mxu0 0
    %792 = vmatpush1.bf16.msra.mxu0 0
    %793 = vmatprep.subr.bf16.mxu0 0
    %794 = vmatpush1.bf16.msra.mxu0 0
    %795 = vmatprep.subr.bf16.mxu0 0
    %796 = vmatpush1.bf16.msra.mxu0 0
    %797 = vmatprep.subr.bf16.mxu0 0
    %798 = vmatpush1.bf16.msra.mxu0 0
    %799 = vmatprep.subr.bf16.mxu0 0
    %800 = vmatpush1.bf16.msra.mxu0 0
    %801 = vmatprep.subr.bf16.mxu0 0
    %802 = vmatpush1.bf16.msra.mxu0 0
    %803 = vmatprep.mubr.bf16.mxu0 0
    %804 = vmatmul.mubr.bf16.gmra.mrb[0].mxu0 %v523
    %v805 = vpop.f32.mrb[0].mxu0
    %v806 = vadd.f32 %v243, %v805
    %v807 = vpop.f32.mrb[0].mxu0
    %v808 = vpop.f32.mrb[0].mxu0
    %v809 = vpop.f32.mrb[0].mxu0
    %810 = vdwg.mxu0
    %v811 = vand.u32 2147483647, %v560
    %v812 = vand.u32 2147483647, %v562
    %v813 = vand.u32 2147483647, %v601
    %v814 = vand.u32 2147483647, %v603
    %v815 = vand.u32 2147483647, %v642
    %v816 = vand.u32 2147483647, %v644
    %v817 = vand.u32 2147483647, %v683
    %v818 = vand.u32 2147483647, %v685
    %v819 = vand.u32 2147483647, %v724
    %v820 = vand.u32 2147483647, %v726
    %v821 = vand.u32 2147483647, %v765
    %v822 = vand.u32 2147483647, %v767
    %v823 = vand.u32 2147483647, %v806
    %824 = vst [vmem:[#allocation8] sm:$0xff] %v811
    %825 = vst [vmem:[#allocation8 + $0x8] sm:$0xff] %v812
    %826 = vst [vmem:[#allocation8 + $0x10] sm:$0xff] %v813
    %827 = vst [vmem:[#allocation8 + $0x18] sm:$0xff] %v814
    %828 = vst [vmem:[#allocation8 + $0x20] sm:$0xff] %v815
    %829 = vst [vmem:[#allocation8 + $0x28] sm:$0xff] %v816
    %830 = vst [vmem:[#allocation8 + $0x30] sm:$0xff] %v817
    %831 = vst [vmem:[#allocation8 + $0x38] sm:$0xff] %v818
    %832 = vst [vmem:[#allocation8 + $0x40] sm:$0xff] %v819
    %833 = vst [vmem:[#allocation8 + $0x48] sm:$0xff] %v820
    %834 = vst [vmem:[#allocation8 + $0x50] sm:$0xff] %v821
    %835 = vst [vmem:[#allocation8 + $0x58] sm:$0xff] %v822
    %836 = vst.msk [vmem:[#allocation8 + $0x60] sm:$0xff] %vm521, %v823
    // Predicated region
    $region34: #{tpu_custom_call.1} parent=1 // pred_check
      _
    $region35: #{tpu_custom_call.1} parent=1 // pred_check_branch
      %838 = sbr.rel (0) target = $region37
    $region36: #{tpu_custom_call.1} parent=1 // pred_region
      %s840 = ssub.s32 1664, 1664
      %841 = vsyncadd [#allocation4], %s840
      %s843 = sshll.u32 [#allocation8], 4
      %s844 = int_to_ptr.vmem [resolvable:$true] %s843
      %846 = dma.vmem_to_hbm [thread:$0]  %s844, 1664, %s5, [#allocation4]
    $region37: #{tpu_custom_call.1} parent=1 // pred_fallthru
      _
    // Predicated region
    $region38: #{tpu_custom_call.1} parent=1 // pred_check
      _
    $region39: #{tpu_custom_call.1} parent=1 // pred_check_branch
      %848 = sbr.rel (0) target = $region41
    $region40: #{tpu_custom_call.1} parent=1 // pred_region
      %849 = dma.done [#allocation4], 1664
    $region41: #{tpu_custom_call.1} parent=1 // pred_fallthru
      _
    %850 = vsyncpa [#allocation3], 1
    %851 = vsyncpa [#allocation6], 1
    %852 = vsyncpa [#allocation4], 1

</llo_original>
